<compile_context>
chip_gen: v7x
topology: tpu7x:2x2x1
jax: 0.10.0
libtpu: 0.0.40
codegen_flags: <defaults>
</compile_context>

<pallas_src>
import math
import jax
import jax.numpy as jnp
from jax import lax
from jax.experimental import pallas as pl
from jax.experimental.pallas import tpu as pltpu

NUM_QUBITS = 4
NUM_BLOCKS = 2
SEQ_LEN = 4                        # self.alpha is torch.rand(1, 1, 4) * 2*pi
C1, C2 = 10, 20
# NOTE: mirrors the PyTorch expression verbatim (ceil of an integer floor-div).
C3 = math.ceil((3 * NUM_QUBITS + 4 * NUM_BLOCKS) // 4) + 1   # conv3 out_channels = 6
OUT_DIM = 3 * NUM_QUBITS + 4 * NUM_BLOCKS                    # final slice length = 20
LN_EPS = 1e-5
assert OUT_DIM <= C3 * SEQ_LEN

SUB, LANES = 8, 128                # one vreg: 8 sublanes x 128 lanes (f32)

# Parameter slab layout: each layer stores W^T (3*Cin, Cout) at an 8-aligned
# row offset, followed by a single bias row; the PReLU slope sits at (OFF_A, 0).
OFF_W1, OFF_B1, OFF_A = 0, 3, 4          # conv1: W^T rows 0..2   (3 rows)
OFF_W2, OFF_B2 = 8, 38                   # conv2: W^T rows 8..37  (30 rows)
OFF_W3, OFF_B3 = 40, 100                 # conv3: W^T rows 40..99 (60 rows)
SLAB_ROWS, SLAB_COLS = 104, LANES        # 104 x 128 f32 = 52 KiB, single DMA


def neqc_cnn_kernel(x_ref, slab_ref, o_ref):
    """One sample per grid step.  x_ref: (1,8,128) with alpha at [0, 0:L, 0]."""
    L = SEQ_LEN
    row = lax.broadcasted_iota(jnp.int32, (SUB, LANES), 0)
    lane = lax.broadcasted_iota(jnp.int32, (SUB, LANES), 1)
    row_ok = row < L
    a = slab_ref[OFF_A:OFF_A + 1, 0:1]                   # PReLU slope, (1, 1)

    def conv(h, cin, w_off, b_off):
        # h: (8,128) with rows >= L and lanes >= cin zero.  Build the im2col
        # operand with rotates only; the three taps land on disjoint lane
        # ranges [0,cin), [cin,2cin), [2cin,3cin), and the circular wrap pulls
        # in zeros (padding rows/lanes are zero), so plain adds assemble it.
        xk = (pltpu.roll(h, 1, 0)                                 # x[t-1]
              + pltpu.roll(h, cin, 1)                             # x[t]
              + pltpu.roll(pltpu.roll(h, SUB - 1, 0), 2 * cin, 1))  # x[t+1]
        w_t = slab_ref[w_off:w_off + 3 * cin, :]                  # (3cin, 128)
        bias = slab_ref[b_off:b_off + 1, :]                       # (1, 128)
        y = jnp.dot(xk[:, 0:3 * cin], w_t,
                    preferred_element_type=jnp.float32) + bias
        return jnp.where(row_ok, y, 0.0)                          # keep pad rows zero

    x = x_ref[0]                                                  # (8, 128)
    h = conv(x, 1, OFF_W1, OFF_B1)
    h = jnp.where(h >= 0.0, h, a * h)                             # PReLU (shared slope)
    h = conv(h, C1, OFF_W2, OFF_B2)
    h = jnp.where(h >= 0.0, h, a * h)
    h = conv(h, C2, OFF_W3, OFF_B3)                               # valid: [0:L, 0:C3]

    # Parameter-free LayerNorm over all C3*L conv3 features (fresh nn.LayerNorm
    # in forward(): weight=1, bias=0).  Two-pass variance for robustness.
    n = C3 * L
    mean = jnp.sum(h) * (1.0 / n)                                 # pad entries are zero
    d = jnp.where(row_ok & (lane < C3), h - mean, 0.0)
    var = jnp.sum(d * d) * (1.0 / n)
    o_ref[0] = d * lax.rsqrt(var + LN_EPS)                        # full-tile unmasked store


@jax.jit
def neqc_cnn_forward_batched(alphas, slab):
    """Batched 'neqc_express' forward.  alphas: (B, L) -> (B, OUT_DIM)."""
    B = alphas.shape[0]
    # Time on sublanes, channel (Cin=1) on lane 0; padding zeros elsewhere.
    x = jnp.zeros((B, SUB, LANES), jnp.float32).at[:, :SEQ_LEN, 0].set(
        alphas.astype(jnp.float32))
    out = pl.pallas_call(
        neqc_cnn_kernel,
        out_shape=jax.ShapeDtypeStruct((B, SUB, LANES), jnp.float32),
        grid=(B,),
        in_specs=[
            pl.BlockSpec((1, SUB, LANES), lambda b: (b, 0, 0)),       # per-sample tile
            pl.BlockSpec((SLAB_ROWS, SLAB_COLS), lambda b: (0, 0)),   # resident slab
        ],
        out_specs=pl.BlockSpec((1, SUB, LANES), lambda b: (b, 0, 0)),
        compiler_params=pltpu.CompilerParams(
            dimension_semantics=("parallel",)),
    )(x, slab)
    # Channel-major flatten (== PyTorch (1, C3, L).view(-1)) + [:OUT_DIM] slice,
    # done on the lane-dense kernel output in the jitted wrapper.
    y = out[:, :SEQ_LEN, :C3]                                         # (B, L, C3)
    y = jnp.swapaxes(y, 1, 2).reshape(B, C3 * SEQ_LEN)                # (B, C3*L)
    return y[:, :OUT_DIM]


@jax.jit
def neqc_cnn_forward(alpha, slab):
    """scheme == 'neqc_express' forward.  alpha: (1, 1, L), NCL like PyTorch."""
    return neqc_cnn_forward_batched(alpha.reshape(1, SEQ_LEN), slab)[0]


def init_params(key):
    """Deterministic Conv1d-style init (uniform +/- 1/sqrt(fan_in)), PReLU=0.25."""
    ks = jax.random.split(key, 6)

    def conv_w(k, cout, cin):
        bound = 1.0 / math.sqrt(cin * 3)
        return jax.random.uniform(k, (cout, cin, 3), jnp.float32, -bound, bound)

    def conv_b(k, cout, cin):
        bound = 1.0 / math.sqrt(cin * 3)
        return jax.random.uniform(k, (cout,), jnp.float32, -bound, bound)

    w1, b1 = conv_w(ks[0], C1, 1), conv_b(ks[1], C1, 1)
    w2, b2 = conv_w(ks[2], C2, C1), conv_b(ks[3], C2, C1)
    w3, b3 = conv_w(ks[4], C3, C2), conv_b(ks[5], C3, C2)
    a = jnp.full((1,), 0.25, jnp.float32)
    return (w1, b1, w2, b2, w3, b3, a)


def pack_for_kernel(params):
    """Pack all conv weights/biases + PReLU slope into one (104, 128) f32 slab.

    Each layer stores W^T with W^T[k*Cin + c, cout] = w[cout, c, k] (so the
    im2col lane order tap-major matches), plus its bias as a single row.
    """
    w1, b1, w2, b2, w3, b3, a = params

    def wt(w):
        cout, cin, k = w.shape
        return jnp.transpose(w, (0, 2, 1)).reshape(cout, k * cin).T   # (3cin, cout)

    slab = jnp.zeros((SLAB_ROWS, SLAB_COLS), jnp.float32)
    for w_off, b_off, w, b in ((OFF_W1, OFF_B1, w1, b1),
                               (OFF_W2, OFF_B2, w2, b2),
                               (OFF_W3, OFF_B3, w3, b3)):
        blk = wt(w)
        r, c = blk.shape
        slab = slab.at[w_off:w_off + r, 0:c].set(blk)
        slab = slab.at[b_off, 0:c].set(b)
    slab = slab.at[OFF_A, 0].set(a[0])
    return slab


def ref_forward(alpha, params):
    """Pure-JAX reference matching the PyTorch forward (neqc_express path)."""
    w1, b1, w2, b2, w3, b3, a = params

    def conv(x, w, b):
        y = lax.conv_general_dilated(
            x, w, (1,), ((1, 1),),
            dimension_numbers=("NCH", "OIH", "NCH"),
            precision=lax.Precision.HIGHEST)
        return y + b[None, :, None]

    prelu = lambda h: jnp.where(h >= 0, h, a[0] * h)
    h = prelu(conv(alpha, w1, b1))
    h = prelu(conv(h, w2, b2))
    h = conv(h, w3, b3)
    y = h.reshape(-1)
    mean = jnp.mean(y)
    var = jnp.mean((y - mean) ** 2)
    y = (y - mean) / jnp.sqrt(var + LN_EPS)
    return y[:OUT_DIM]


if __name__ == "__main__":
    key = jax.random.PRNGKey(0)
    kp, ka, kb = jax.random.split(key, 3)
    params = init_params(kp)
    slab = pack_for_kernel(params)

    # Single-sample path (module semantics: alpha of shape (1, 1, 4)).
    alpha = jax.random.uniform(ka, (1, 1, SEQ_LEN), jnp.float32) * (2 * math.pi)
    y = jax.block_until_ready(neqc_cnn_forward(alpha, slab))
    y_ref = ref_forward(alpha, params)
    assert y.shape == (OUT_DIM,), y.shape
    assert jnp.allclose(y, y_ref, atol=2e-3, rtol=2e-3), (y, y_ref)

    # Batched path: parallel grid over samples, slab VMEM-resident.
    B = 8
    alphas = jax.random.uniform(kb, (B, SEQ_LEN), jnp.float32) * (2 * math.pi)
    yb = jax.block_until_ready(neqc_cnn_forward_batched(alphas, slab))
    yb_ref = jnp.stack([ref_forward(alphas[i].reshape(1, 1, SEQ_LEN), params)
                        for i in range(B)])
    assert yb.shape == (B, OUT_DIM), yb.shape
    assert jnp.allclose(yb, yb_ref, atol=2e-3, rtol=2e-3), (yb, yb_ref)

    print("KERNEL_OK")
</pallas_src>

<mosaic_0001>
module attributes {stable_mosaic.version = 11 : i64} {
  func.func @neqc_cnn_kernel(%arg0: i32, %arg1: memref<1x8x128xf32, #tpu.memory_space<vmem>>, %arg2: memref<104x128xf32, #tpu.memory_space<vmem>>, %arg3: memref<1x8x128xf32, #tpu.memory_space<vmem>>) attributes {dimension_semantics = [#tpu.dimension_semantics<parallel>], iteration_bounds = array<i64: 1>, scalar_prefetch = 0 : i64, scratch_operands = 0 : i64, tpu.core_type = #tpu.core_type<tc>, window_params = [{transform_indices = @transform_0, window_bounds = array<i64: 1, 8, 128>}, {pipeline_mode = #tpu.pipeline_mode<synchronous>, transform_indices = @transform_1, window_bounds = array<i64: 104, 128>}, {transform_indices = @transform_2, window_bounds = array<i64: 1, 8, 128>}]} {
    %0 = tpu.iota {dimensions = array<i32: 0>} : vector<8x128xi32>
    %1 = tpu.iota {dimensions = array<i32: 1>} : vector<8x128xi32>
    %c4_i32 = arith.constant 4 : i32
    %2 = vector.broadcast %c4_i32 : i32 to vector<8x128xi32>
    %3 = arith.cmpi slt, %0, %2 : vector<8x128xi32>
    %c4 = arith.constant 4 : index
    %c0 = arith.constant 0 : index
    %4 = vector.load %arg2[%c4, %c0] : memref<104x128xf32, #tpu.memory_space<vmem>>, vector<1x1xf32>
    %c0_0 = arith.constant 0 : index
    %c0_1 = arith.constant 0 : index
    %c0_2 = arith.constant 0 : index
    %5 = vector.load %arg1[%c0_0, %c0_1, %c0_2] : memref<1x8x128xf32, #tpu.memory_space<vmem>>, vector<1x8x128xf32>
    %6 = vector.shape_cast %5 : vector<1x8x128xf32> to vector<8x128xf32>
    %c1_i32 = arith.constant 1 : i32
    %7 = tpu.dynamic_rotate %6 by %c1_i32 dim 0 : vector<8x128xf32>, i32 -> vector<8x128xf32>
    %c1_i32_3 = arith.constant 1 : i32
    %8 = tpu.dynamic_rotate %6 by %c1_i32_3 dim 1 : vector<8x128xf32>, i32 -> vector<8x128xf32>
    %9 = arith.addf %7, %8 : vector<8x128xf32>
    %c7_i32 = arith.constant 7 : i32
    %10 = tpu.dynamic_rotate %6 by %c7_i32 dim 0 : vector<8x128xf32>, i32 -> vector<8x128xf32>
    %c2_i32 = arith.constant 2 : i32
    %11 = tpu.dynamic_rotate %10 by %c2_i32 dim 1 : vector<8x128xf32>, i32 -> vector<8x128xf32>
    %12 = arith.addf %9, %11 : vector<8x128xf32>
    %c0_4 = arith.constant 0 : index
    %c0_5 = arith.constant 0 : index
    %13 = vector.load %arg2[%c0_4, %c0_5] : memref<104x128xf32, #tpu.memory_space<vmem>>, vector<3x128xf32>
    %c3 = arith.constant 3 : index
    %c0_6 = arith.constant 0 : index
    %14 = vector.load %arg2[%c3, %c0_6] : memref<104x128xf32, #tpu.memory_space<vmem>>, vector<1x128xf32>
    %15 = vector.extract_strided_slice %12 {offsets = [0, 0], sizes = [8, 3], strides = [1, 1]} : vector<8x128xf32> to vector<8x3xf32>
    %cst = arith.constant dense<0.000000e+00> : vector<8x128xf32>
    %16 = tpu.matmul %15, %13, %cst {dimension_numbers = #tpu.dot_dimension_numbers<[1], [0], [0], [1], [0, 0, 1, 1], [], []>} : vector<8x3xf32>, vector<3x128xf32>, vector<8x128xf32> -> vector<8x128xf32>
    %17 = vector.broadcast %14 : vector<1x128xf32> to vector<8x128xf32>
    %18 = arith.addf %16, %17 : vector<8x128xf32>
    %cst_7 = arith.constant 0.000000e+00 : f32
    %19 = vector.broadcast %cst_7 : f32 to vector<8x128xf32>
    %20 = arith.select %3, %18, %19 : vector<8x128xi1>, vector<8x128xf32>
    %cst_8 = arith.constant 0.000000e+00 : f32
    %21 = vector.broadcast %cst_8 : f32 to vector<8x128xf32>
    %22 = arith.cmpf oge, %20, %21 : vector<8x128xf32>
    %23 = vector.broadcast %4 : vector<1x1xf32> to vector<8x128xf32>
    %24 = arith.mulf %23, %20 : vector<8x128xf32>
    %25 = arith.select %22, %20, %24 : vector<8x128xi1>, vector<8x128xf32>
    %c1_i32_9 = arith.constant 1 : i32
    %26 = tpu.dynamic_rotate %25 by %c1_i32_9 dim 0 : vector<8x128xf32>, i32 -> vector<8x128xf32>
    %c10_i32 = arith.constant 10 : i32
    %27 = tpu.dynamic_rotate %25 by %c10_i32 dim 1 : vector<8x128xf32>, i32 -> vector<8x128xf32>
    %28 = arith.addf %26, %27 : vector<8x128xf32>
    %c7_i32_10 = arith.constant 7 : i32
    %29 = tpu.dynamic_rotate %25 by %c7_i32_10 dim 0 : vector<8x128xf32>, i32 -> vector<8x128xf32>
    %c20_i32 = arith.constant 20 : i32
    %30 = tpu.dynamic_rotate %29 by %c20_i32 dim 1 : vector<8x128xf32>, i32 -> vector<8x128xf32>
    %31 = arith.addf %28, %30 : vector<8x128xf32>
    %c8 = arith.constant 8 : index
    %c0_11 = arith.constant 0 : index
    %32 = vector.load %arg2[%c8, %c0_11] : memref<104x128xf32, #tpu.memory_space<vmem>>, vector<30x128xf32>
    %c38 = arith.constant 38 : index
    %c0_12 = arith.constant 0 : index
    %33 = vector.load %arg2[%c38, %c0_12] : memref<104x128xf32, #tpu.memory_space<vmem>>, vector<1x128xf32>
    %34 = vector.extract_strided_slice %31 {offsets = [0, 0], sizes = [8, 30], strides = [1, 1]} : vector<8x128xf32> to vector<8x30xf32>
    %cst_13 = arith.constant dense<0.000000e+00> : vector<8x128xf32>
    %35 = tpu.matmul %34, %32, %cst_13 {dimension_numbers = #tpu.dot_dimension_numbers<[1], [0], [0], [1], [0, 0, 1, 1], [], []>} : vector<8x30xf32>, vector<30x128xf32>, vector<8x128xf32> -> vector<8x128xf32>
    %36 = vector.broadcast %33 : vector<1x128xf32> to vector<8x128xf32>
    %37 = arith.addf %35, %36 : vector<8x128xf32>
    %cst_14 = arith.constant 0.000000e+00 : f32
    %38 = vector.broadcast %cst_14 : f32 to vector<8x128xf32>
    %39 = arith.select %3, %37, %38 : vector<8x128xi1>, vector<8x128xf32>
    %cst_15 = arith.constant 0.000000e+00 : f32
    %40 = vector.broadcast %cst_15 : f32 to vector<8x128xf32>
    %41 = arith.cmpf oge, %39, %40 : vector<8x128xf32>
    %42 = vector.broadcast %4 : vector<1x1xf32> to vector<8x128xf32>
    %43 = arith.mulf %42, %39 : vector<8x128xf32>
    %44 = arith.select %41, %39, %43 : vector<8x128xi1>, vector<8x128xf32>
    %c1_i32_16 = arith.constant 1 : i32
    %45 = tpu.dynamic_rotate %44 by %c1_i32_16 dim 0 : vector<8x128xf32>, i32 -> vector<8x128xf32>
    %c20_i32_17 = arith.constant 20 : i32
    %46 = tpu.dynamic_rotate %44 by %c20_i32_17 dim 1 : vector<8x128xf32>, i32 -> vector<8x128xf32>
    %47 = arith.addf %45, %46 : vector<8x128xf32>
    %c7_i32_18 = arith.constant 7 : i32
    %48 = tpu.dynamic_rotate %44 by %c7_i32_18 dim 0 : vector<8x128xf32>, i32 -> vector<8x128xf32>
    %c40_i32 = arith.constant 40 : i32
    %49 = tpu.dynamic_rotate %48 by %c40_i32 dim 1 : vector<8x128xf32>, i32 -> vector<8x128xf32>
    %50 = arith.addf %47, %49 : vector<8x128xf32>
    %c40 = arith.constant 40 : index
    %c0_19 = arith.constant 0 : index
    %51 = vector.load %arg2[%c40, %c0_19] : memref<104x128xf32, #tpu.memory_space<vmem>>, vector<60x128xf32>
    %c100 = arith.constant 100 : index
    %c0_20 = arith.constant 0 : index
    %52 = vector.load %arg2[%c100, %c0_20] : memref<104x128xf32, #tpu.memory_space<vmem>>, vector<1x128xf32>
    %53 = vector.extract_strided_slice %50 {offsets = [0, 0], sizes = [8, 60], strides = [1, 1]} : vector<8x128xf32> to vector<8x60xf32>
    %cst_21 = arith.constant dense<0.000000e+00> : vector<8x128xf32>
    %54 = tpu.matmul %53, %51, %cst_21 {dimension_numbers = #tpu.dot_dimension_numbers<[1], [0], [0], [1], [0, 0, 1, 1], [], []>} : vector<8x60xf32>, vector<60x128xf32>, vector<8x128xf32> -> vector<8x128xf32>
    %55 = vector.broadcast %52 : vector<1x128xf32> to vector<8x128xf32>
    %56 = arith.addf %54, %55 : vector<8x128xf32>
    %cst_22 = arith.constant 0.000000e+00 : f32
    %57 = vector.broadcast %cst_22 : f32 to vector<8x128xf32>
    %58 = arith.select %3, %56, %57 : vector<8x128xi1>, vector<8x128xf32>
    %59 = vector.shape_cast %58 : vector<8x128xf32> to vector<1x8x128xf32>
    %cst_23 = arith.constant dense<0.000000e+00> : vector<1xf32>
    %60 = vector.multi_reduction <add>, %59, %cst_23 [1, 2] : vector<1x8x128xf32> to vector<1xf32>
    %61 = vector.shape_cast %60 : vector<1xf32> to vector<1x1x1xf32>
    %62 = vector.extract %61[0, 0, 0] : f32 from vector<1x1x1xf32>
    %cst_24 = arith.constant 0.0416666679 : f32
    %63 = arith.mulf %62, %cst_24 : f32
    %c6_i32 = arith.constant 6 : i32
    %64 = vector.broadcast %c6_i32 : i32 to vector<8x128xi32>
    %65 = arith.cmpi slt, %1, %64 : vector<8x128xi32>
    %66 = arith.andi %3, %65 : vector<8x128xi1>
    %67 = vector.broadcast %63 : f32 to vector<8x128xf32>
    %68 = arith.subf %58, %67 : vector<8x128xf32>
    %cst_25 = arith.constant 0.000000e+00 : f32
    %69 = vector.broadcast %cst_25 : f32 to vector<8x128xf32>
    %70 = arith.select %66, %68, %69 : vector<8x128xi1>, vector<8x128xf32>
    %71 = arith.mulf %70, %70 : vector<8x128xf32>
    %72 = vector.shape_cast %71 : vector<8x128xf32> to vector<1x8x128xf32>
    %cst_26 = arith.constant dense<0.000000e+00> : vector<1xf32>
    %73 = vector.multi_reduction <add>, %72, %cst_26 [1, 2] : vector<1x8x128xf32> to vector<1xf32>
    %74 = vector.shape_cast %73 : vector<1xf32> to vector<1x1x1xf32>
    %75 = vector.extract %74[0, 0, 0] : f32 from vector<1x1x1xf32>
    %cst_27 = arith.constant 0.0416666679 : f32
    %76 = arith.mulf %75, %cst_27 : f32
    %cst_28 = arith.constant 9.99999974E-6 : f32
    %77 = arith.addf %76, %cst_28 : f32
    %78 = math.rsqrt %77 : f32
    %79 = vector.broadcast %78 : f32 to vector<8x128xf32>
    %80 = arith.mulf %70, %79 : vector<8x128xf32>
    %c0_29 = arith.constant 0 : index
    %c0_30 = arith.constant 0 : index
    %c0_31 = arith.constant 0 : index
    %81 = vector.load %arg3[%c0_29, %c0_30, %c0_31] : memref<1x8x128xf32, #tpu.memory_space<vmem>>, vector<1x8x128xf32>
    %82 = vector.shape_cast %81 : vector<1x8x128xf32> to vector<8x128xf32>
    %83 = vector.shape_cast %80 : vector<8x128xf32> to vector<1x8x128xf32>
    tpu.vector_store %arg3[%c0_29, %c0_30, %c0_31], %83 {strides = array<i32>} : memref<1x8x128xf32, #tpu.memory_space<vmem>>, vector<1x8x128xf32>,
    return
  }
  func.func @transform_0(%arg0: i32) -> (i32, i32, i32) {
    %c0_i32 = arith.constant 0 : i32
    %c0_i32_0 = arith.constant 0 : i32
    %c0_i32_1 = arith.constant 0 : i32
    return %arg0, %c0_i32, %c0_i32_0 : i32, i32, i32
  }
  func.func @transform_1(%arg0: i32) -> (i32, i32) {
    %c0_i32 = arith.constant 0 : i32
    %c0_i32_0 = arith.constant 0 : i32
    %c0_i32_1 = arith.constant 0 : i32
    return %c0_i32, %c0_i32_0 : i32, i32
  }
  func.func @transform_2(%arg0: i32) -> (i32, i32, i32) {
    %c0_i32 = arith.constant 0 : i32
    %c0_i32_0 = arith.constant 0 : i32
    %c0_i32_1 = arith.constant 0 : i32
    return %arg0, %c0_i32, %c0_i32_0 : i32, i32, i32
  }
}

</mosaic_0001>

<llo_original>
// kernel: neqc_cnn_forward_batched.1
$region0: #{neqc_cnn_forward_batched.1}
  #allocation0 [shape = 'u32[]', space=smem, size = 0x4, offset = 0x4, fixed_abs, tag = 'smem constant byte address 0x4 - core index']
  #allocation1 [shape = 'u32[144,128]{1,0:T(1,128)}', space=vmem, size = 0x12000, scoped, tag = 'internal scratch']
  %s0 = inlined_call_operand.vmem [shape: f32[1,8,128], index: 0, kind: input, shape index: {}]
  %s1 = inlined_call_operand.hbm [shape: f32[104,128], index: 1, kind: input, shape index: {}]
  %s2 = inlined_call_operand.vmem [shape: f32[1,8,128], index: 2, kind: output, shape index: {}]
  %s3 = sld [smem:[#allocation0]]
  $region22: #{neqc_cnn_forward_batched.1} parent=0
    _
  %s5 = ssub.s32 1, %s3
  %s6 = scalar_select 0, %s5, %s3
  $region1: #{neqc_cnn_forward_batched.1} parent=0
    #allocation2 [shape = 'u8[53248]{0}', space=vmem, size = 0xd000, scoped, tag = 'input window, operand 1, single buffered']
    #allocation3 [shape = 's32[1]{0}', space=sflag, size = 0x4, scoped, tag = 'scoped memory for neqc_cnn_forward_batched.1']
    %7 = vsyncpa [#allocation3], 0
    // Predicated region
    $region2: #{neqc_cnn_forward_batched.1} parent=1 // pred_check
      _
    $region3: #{neqc_cnn_forward_batched.1} parent=1 // pred_check_branch
      %9 = sbr.rel (0) target = $region5
    $region4: #{neqc_cnn_forward_batched.1} parent=1 // pred_region
      _
    $region5: #{neqc_cnn_forward_batched.1} parent=1 // pred_fallthru
      _
    // Predicated region
    $region6: #{neqc_cnn_forward_batched.1} parent=1 // pred_check
      _
    $region7: #{neqc_cnn_forward_batched.1} parent=1 // pred_check_branch
      %11 = sbr.rel (0) target = $region9
    $region8: #{neqc_cnn_forward_batched.1} parent=1 // pred_region
      %s13 = ssub.s32 1664, 1664
      %14 = vsyncadd [#allocation3], %s13
      %s15 = sshll.u32 [#allocation2], 4
      %s16 = int_to_ptr.vmem [resolvable:$true] %s15
      %21 = dma.hbm_to_vmem [thread:$0]  %s1, 1664, %s16, [#allocation3], 128, 128, 8
    $region9: #{neqc_cnn_forward_batched.1} parent=1 // pred_fallthru
      _
    // Predicated region
    $region10: #{neqc_cnn_forward_batched.1} parent=1 // pred_check
      _
    $region11: #{neqc_cnn_forward_batched.1} parent=1 // pred_check_branch
      %23 = sbr.rel (0) target = $region13
    $region12: #{neqc_cnn_forward_batched.1} parent=1 // pred_region
      %24 = dma.done [#allocation3], 1664
    $region13: #{neqc_cnn_forward_batched.1} parent=1 // pred_fallthru
      _
    %v25 = vlaneseq
    %v26 = vshrl.u32 %v25, 7
    %v27 = vlaneseq
    %v28 = vand.u32 %v27, 127
    %vm29 = vcmp.lt.s32.totalorder %v26, 4
    %v30 = vld [vmem:[#allocation2 + $0x4] sm:$0x1]
    %v31 = vld [vmem:[%s0] sm:$0xff]
    %v32 = vrot.slane %v31, 7
    %33 = vrot.lane.b32.xlu0 %v31, 1
    %v34 = vpop.permute.xlu0 %33
    %v35 = vadd.f32 %v32, %v34
    %v36 = vrot.slane %v31, 1
    %37 = vrot.lane.b32.xlu0 %v36, 2
    %v38 = vpop.permute.xlu0 %37
    %v39 = vadd.f32 %v35, %v38
    %v40 = vld [vmem:[#allocation2] sm:$0x7]
    %v41 = vld [vmem:[#allocation2 + $0x3] sm:$0x1]
    %v42 = vlaneseq
    %v43 = vshrl.u32 %v42, 7
    %v44 = vsub.s32 0, %v43
    %v45 = vrot.slane %v41, %v44
    %vm46 = vcmask 23552
    %v48 = vsel %vm46, %v39, 0
    %vm50 = vcmask 1042432
    %v52 = vsel %vm50, %v40, 0
    %54 = vmatprep.subr.mxu0 0.0
    %55 = vmatpush1.msra.mxu0 %v52
    %56 = vmatprep.subr.mxu0 0.0
    %57 = vmatpush1.msra.mxu0 0.0
    %58 = vmatprep.subr.mxu0 0.0
    %59 = vmatpush1.msra.mxu0 0.0
    %60 = vmatprep.subr.mxu0 0.0
    %61 = vmatpush1.msra.mxu0 0.0
    %62 = vmatprep.subr.mxu0 0.0
    %63 = vmatpush1.msra.mxu0 0.0
    %64 = vmatprep.subr.mxu0 0.0
    %65 = vmatpush1.msra.mxu0 0.0
    %66 = vmatprep.subr.mxu0 0.0
    %67 = vmatpush1.msra.mxu0 0.0
    %68 = vmatprep.subr.mxu0 0.0
    %69 = vmatpush1.msra.mxu0 0.0
    %70 = vmatprep.subr.mxu0 0.0
    %71 = vmatpush1.msra.mxu0 0.0
    %72 = vmatprep.subr.mxu0 0.0
    %73 = vmatpush1.msra.mxu0 0.0
    %74 = vmatprep.subr.mxu0 0.0
    %75 = vmatpush1.msra.mxu0 0.0
    %76 = vmatprep.subr.mxu0 0.0
    %77 = vmatpush1.msra.mxu0 0.0
    %78 = vmatprep.subr.mxu0 0.0
    %79 = vmatpush1.msra.mxu0 0.0
    %80 = vmatprep.subr.mxu0 0.0
    %81 = vmatpush1.msra.mxu0 0.0
    %82 = vmatprep.subr.mxu0 0.0
    %83 = vmatpush1.msra.mxu0 0.0
    %84 = vmatprep.subr.mxu0 0.0
    %85 = vmatpush1.msra.mxu0 0.0
    %86 = vmatprep.subr.mxu0 0.0
    %87 = vmatpush1.msra.mxu0 0.0
    %88 = vmatprep.subr.mxu0 0.0
    %89 = vmatpush1.msra.mxu0 0.0
    %90 = vmatprep.subr.mxu0 0.0
    %91 = vmatpush1.msra.mxu0 0.0
    %92 = vmatprep.subr.mxu0 0.0
    %93 = vmatpush1.msra.mxu0 0.0
    %94 = vmatprep.subr.mxu0 0.0
    %95 = vmatpush1.msra.mxu0 0.0
    %96 = vmatprep.subr.mxu0 0.0
    %97 = vmatpush1.msra.mxu0 0.0
    %98 = vmatprep.subr.mxu0 0.0
    %99 = vmatpush1.msra.mxu0 0.0
    %100 = vmatprep.subr.mxu0 0.0
    %101 = vmatpush1.msra.mxu0 0.0
    %102 = vmatprep.subr.mxu0 0.0
    %103 = vmatpush1.msra.mxu0 0.0
    %104 = vmatprep.subr.mxu0 0.0
    %105 = vmatpush1.msra.mxu0 0.0
    %106 = vmatprep.subr.mxu0 0.0
    %107 = vmatpush1.msra.mxu0 0.0
    %108 = vmatprep.subr.mxu0 0.0
    %109 = vmatpush1.msra.mxu0 0.0
    %110 = vmatprep.subr.mxu0 0.0
    %111 = vmatpush1.msra.mxu0 0.0
    %112 = vmatprep.subr.mxu0 0.0
    %113 = vmatpush1.msra.mxu0 0.0
    %114 = vmatprep.subr.mxu0 0.0
    %115 = vmatpush1.msra.mxu0 0.0
    %116 = vmatprep.subr.mxu0 0.0
    %117 = vmatpush1.msra.mxu0 0.0
    %118 = vmatprep.mubr.f32.mxu0 0.0
    %119 = vmatmul.mubr.f32.gmra.mrb[0].mxu0 %v48
    %v120 = vpop.f32.mrb[0].mxu0
    %v121 = vadd.f32 %v45, %v120
    %v122 = vpop.f32.mrb[0].mxu0
    %123 = vdwg.mxu0
    %v124 = vsel %vm29, %v121, 0.0
    %vm125 = vcmp.ge.f32.partialorder %v124, 0.0
    %s127 = vtos %v30
    %v128 = vstv %s127
    %v130 = vmul.f32 %v128, %v124
    %v131 = vsel %vm125, %v124, %v130
    %v132 = vrot.slane %v131, 7
    %133 = vrot.lane.b32.xlu0 %v131, 10
    %v134 = vpop.permute.xlu0 %133
    %v135 = vadd.f32 %v132, %v134
    %v136 = vrot.slane %v131, 1
    %137 = vrot.lane.b32.xlu0 %v136, 20
    %v138 = vpop.permute.xlu0 %137
    %v139 = vadd.f32 %v135, %v138
    %v140 = vld [vmem:[#allocation2 + $0x8] sm:$0xff]
    %v141 = vld [vmem:[#allocation2 + $0x10] sm:$0xff]
    %v142 = vld [vmem:[#allocation2 + $0x18] sm:$0xff]
    %v143 = vld [vmem:[#allocation2 + $0x20] sm:$0x3f]
    %v144 = vld [vmem:[#allocation2 + $0x26] sm:$0x1]
    %v145 = vlaneseq
    %v146 = vshrl.u32 %v145, 7
    %v147 = vsub.s32 0, %v146
    %v148 = vrot.slane %v144, %v147
    %vm149 = vcmask 244736
    %v151 = vsel %vm149, %v139, 0
    %vm153 = vcmask 1045504
    %v155 = vsel %vm153, %v143, 0
    %157 = vmatprep.subr.mxu0 0.0
    %158 = vmatpush1.msra.mxu0 %v140
    %159 = vmatprep.subr.mxu0 0.0
    %160 = vmatpush1.msra.mxu0 %v141
    %161 = vmatprep.subr.mxu0 0.0
    %162 = vmatpush1.msra.mxu0 %v142
    %163 = vmatprep.subr.mxu0 0.0
    %164 = vmatpush1.msra.mxu0 %v155
    %165 = vmatprep.subr.mxu0 0.0
    %166 = vmatpush1.msra.mxu0 0.0
    %167 = vmatprep.subr.mxu0 0.0
    %168 = vmatpush1.msra.mxu0 0.0
    %169 = vmatprep.subr.mxu0 0.0
    %170 = vmatpush1.msra.mxu0 0.0
    %171 = vmatprep.subr.mxu0 0.0
    %172 = vmatpush1.msra.mxu0 0.0
    %173 = vmatprep.subr.mxu0 0.0
    %174 = vmatpush1.msra.mxu0 0.0
    %175 = vmatprep.subr.mxu0 0.0
    %176 = vmatpush1.msra.mxu0 0.0
    %177 = vmatprep.subr.mxu0 0.0
    %178 = vmatpush1.msra.mxu0 0.0
    %179 = vmatprep.subr.mxu0 0.0
    %180 = vmatpush1.msra.mxu0 0.0
    %181 = vmatprep.subr.mxu0 0.0
    %182 = vmatpush1.msra.mxu0 0.0
    %183 = vmatprep.subr.mxu0 0.0
    %184 = vmatpush1.msra.mxu0 0.0
    %185 = vmatprep.subr.mxu0 0.0
    %186 = vmatpush1.msra.mxu0 0.0
    %187 = vmatprep.subr.mxu0 0.0
    %188 = vmatpush1.msra.mxu0 0.0
    %189 = vmatprep.subr.mxu0 0.0
    %190 = vmatpush1.msra.mxu0 0.0
    %191 = vmatprep.subr.mxu0 0.0
    %192 = vmatpush1.msra.mxu0 0.0
    %193 = vmatprep.subr.mxu0 0.0
    %194 = vmatpush1.msra.mxu0 0.0
    %195 = vmatprep.subr.mxu0 0.0
    %196 = vmatpush1.msra.mxu0 0.0
    %197 = vmatprep.subr.mxu0 0.0
    %198 = vmatpush1.msra.mxu0 0.0
    %199 = vmatprep.subr.mxu0 0.0
    %200 = vmatpush1.msra.mxu0 0.0
    %201 = vmatprep.subr.mxu0 0.0
    %202 = vmatpush1.msra.mxu0 0.0
    %203 = vmatprep.subr.mxu0 0.0
    %204 = vmatpush1.msra.mxu0 0.0
    %205 = vmatprep.subr.mxu0 0.0
    %206 = vmatpush1.msra.mxu0 0.0
    %207 = vmatprep.subr.mxu0 0.0
    %208 = vmatpush1.msra.mxu0 0.0
    %209 = vmatprep.subr.mxu0 0.0
    %210 = vmatpush1.msra.mxu0 0.0
    %211 = vmatprep.subr.mxu0 0.0
    %212 = vmatpush1.msra.mxu0 0.0
    %213 = vmatprep.subr.mxu0 0.0
    %214 = vmatpush1.msra.mxu0 0.0
    %215 = vmatprep.subr.mxu0 0.0
    %216 = vmatpush1.msra.mxu0 0.0
    %217 = vmatprep.subr.mxu0 0.0
    %218 = vmatpush1.msra.mxu0 0.0
    %219 = vmatprep.subr.mxu0 0.0
    %220 = vmatpush1.msra.mxu0 0.0
    %221 = vmatprep.mubr.f32.mxu0 0.0
    %222 = vmatmul.mubr.f32.gmra.mrb[0].mxu0 %v151
    %v223 = vpop.f32.mrb[0].mxu0
    %v224 = vadd.f32 %v148, %v223
    %v225 = vpop.f32.mrb[0].mxu0
    %226 = vdwg.mxu0
    %v227 = vsel %vm29, %v224, 0.0
    %vm228 = vcmp.ge.f32.partialorder %v227, 0.0
    %v229 = vmul.f32 %v128, %v227
    %v230 = vsel %vm228, %v227, %v229
    %v231 = vrot.slane %v230, 7
    %232 = vrot.lane.b32.xlu0 %v230, 20
    %v233 = vpop.permute.xlu0 %232
    %v234 = vadd.f32 %v231, %v233
    %v235 = vrot.slane %v230, 1
    %236 = vrot.lane.b32.xlu0 %v235, 40
    %v237 = vpop.permute.xlu0 %236
    %v238 = vadd.f32 %v234, %v237
    %v239 = vld [vmem:[#allocation2 + $0x28] sm:$0xff]
    %v240 = vld [vmem:[#allocation2 + $0x30] sm:$0xff]
    %v241 = vld [vmem:[#allocation2 + $0x38] sm:$0xff]
    %v242 = vld [vmem:[#allocation2 + $0x40] sm:$0xff]
    %v243 = vld [vmem:[#allocation2 + $0x48] sm:$0xff]
    %v244 = vld [vmem:[#allocation2 + $0x50] sm:$0xff]
    %v245 = vld [vmem:[#allocation2 + $0x58] sm:$0xff]
    %v246 = vld [vmem:[#allocation2 + $0x60] sm:$0xf]
    %v247 = vld [vmem:[#allocation2 + $0x64] sm:$0x1]
    %v248 = vlaneseq
    %v249 = vshrl.u32 %v248, 7
    %v250 = vsub.s32 0, %v249
    %v251 = vrot.slane %v247, %v250
    %vm252 = vcmask 490496
    %v254 = vsel %vm252, %v238, 0
    %vm256 = vcmask 1043456
    %v258 = vsel %vm256, %v246, 0
    %260 = vmatprep.subr.mxu0 0.0
    %261 = vmatpush1.msra.mxu0 %v239
    %262 = vmatprep.subr.mxu0 0.0
    %263 = vmatpush1.msra.mxu0 %v240
    %264 = vmatprep.subr.mxu0 0.0
    %265 = vmatpush1.msra.mxu0 %v241
    %266 = vmatprep.subr.mxu0 0.0
    %267 = vmatpush1.msra.mxu0 %v242
    %268 = vmatprep.subr.mxu0 0.0
    %269 = vmatpush1.msra.mxu0 %v243
    %270 = vmatprep.subr.mxu0 0.0
    %271 = vmatpush1.msra.mxu0 %v244
    %272 = vmatprep.subr.mxu0 0.0
    %273 = vmatpush1.msra.mxu0 %v245
    %274 = vmatprep.subr.mxu0 0.0
    %275 = vmatpush1.msra.mxu0 %v258
    %276 = vmatprep.subr.mxu0 0.0
    %277 = vmatpush1.msra.mxu0 0.0
    %278 = vmatprep.subr.mxu0 0.0
    %279 = vmatpush1.msra.mxu0 0.0
    %280 = vmatprep.subr.mxu0 0.0
    %281 = vmatpush1.msra.mxu0 0.0
    %282 = vmatprep.subr.mxu0 0.0
    %283 = vmatpush1.msra.mxu0 0.0
    %284 = vmatprep.subr.mxu0 0.0
    %285 = vmatpush1.msra.mxu0 0.0
    %286 = vmatprep.subr.mxu0 0.0
    %287 = vmatpush1.msra.mxu0 0.0
    %288 = vmatprep.subr.mxu0 0.0
    %289 = vmatpush1.msra.mxu0 0.0
    %290 = vmatprep.subr.mxu0 0.0
    %291 = vmatpush1.msra.mxu0 0.0
    %292 = vmatprep.subr.mxu0 0.0
    %293 = vmatpush1.msra.mxu0 0.0
    %294 = vmatprep.subr.mxu0 0.0
    %295 = vmatpush1.msra.mxu0 0.0
    %296 = vmatprep.subr.mxu0 0.0
    %297 = vmatpush1.msra.mxu0 0.0
    %298 = vmatprep.subr.mxu0 0.0
    %299 = vmatpush1.msra.mxu0 0.0
    %300 = vmatprep.subr.mxu0 0.0
    %301 = vmatpush1.msra.mxu0 0.0
    %302 = vmatprep.subr.mxu0 0.0
    %303 = vmatpush1.msra.mxu0 0.0
    %304 = vmatprep.subr.mxu0 0.0
    %305 = vmatpush1.msra.mxu0 0.0
    %306 = vmatprep.subr.mxu0 0.0
    %307 = vmatpush1.msra.mxu0 0.0
    %308 = vmatprep.subr.mxu0 0.0
    %309 = vmatpush1.msra.mxu0 0.0
    %310 = vmatprep.subr.mxu0 0.0
    %311 = vmatpush1.msra.mxu0 0.0
    %312 = vmatprep.subr.mxu0 0.0
    %313 = vmatpush1.msra.mxu0 0.0
    %314 = vmatprep.subr.mxu0 0.0
    %315 = vmatpush1.msra.mxu0 0.0
    %316 = vmatprep.subr.mxu0 0.0
    %317 = vmatpush1.msra.mxu0 0.0
    %318 = vmatprep.subr.mxu0 0.0
    %319 = vmatpush1.msra.mxu0 0.0
    %320 = vmatprep.subr.mxu0 0.0
    %321 = vmatpush1.msra.mxu0 0.0
    %322 = vmatprep.subr.mxu0 0.0
    %323 = vmatpush1.msra.mxu0 0.0
    %324 = vmatprep.mubr.f32.mxu0 0.0
    %325 = vmatmul.mubr.f32.gmra.mrb[0].mxu0 %v254
    %v326 = vpop.f32.mrb[0].mxu0
    %v327 = vadd.f32 %v251, %v326
    %v328 = vpop.f32.mrb[0].mxu0
    %329 = vdwg.mxu0
    %v330 = vsel %vm29, %v327, 0.0
    %331 = vadd.xlane.f32.xlu0 %v330
    %v332 = vpop.xlane.xlu0 %331
    %v333 = vrot.slane %v332, 4
    %v334 = vadd.f32 %v332, %v333
    %v335 = vrot.slane %v334, 2
    %v336 = vadd.f32 %v334, %v335
    %v337 = vrot.slane %v336, 1
    %v338 = vadd.f32 %v336, %v337
    %s339 = vtos %v338
    %s340 = smul.f32 %s339, 0.041666668
    %vm341 = vcmp.lt.s32.totalorder %v28, 6
    %vm342 = vmand %vm29, %vm341
    %v343 = vstv %s340
    %v344 = vsub.f32 %v330, %v343
    %v345 = vsel %vm342, %v344, 0.0
    %v346 = vmul.f32 %v345, %v345
    %347 = vadd.xlane.f32.xlu0 %v346
    %v348 = vpop.xlane.xlu0 %347
    %v349 = vrot.slane %v348, 4
    %v350 = vadd.f32 %v348, %v349
    %v351 = vrot.slane %v350, 2
    %v352 = vadd.f32 %v350, %v351
    %v353 = vrot.slane %v352, 1
    %v354 = vadd.f32 %v352, %v353
    %s355 = vtos %v354
    %s356 = smul.f32 %s355, 0.041666668
    %s357 = sadd.f32 %s356, 1e-05
    %v358 = vstv %s357
    %v359 = vrsqrt.pop %v358
    %s360 = vtos %v359
    %v361 = vstv %s360
    %v362 = vmul.f32 %v345, %v361
    %363 = vst [vmem:[%s2] sm:$0xff] %v362
    // Predicated region
    $region14: #{neqc_cnn_forward_batched.1} parent=1 // pred_check
      _
    $region15: #{neqc_cnn_forward_batched.1} parent=1 // pred_check_branch
      %365 = sbr.rel (0) target = $region17
    $region16: #{neqc_cnn_forward_batched.1} parent=1 // pred_region
      _
    $region17: #{neqc_cnn_forward_batched.1} parent=1 // pred_fallthru
      _
    // Predicated region
    $region18: #{neqc_cnn_forward_batched.1} parent=1 // pred_check
      _
    $region19: #{neqc_cnn_forward_batched.1} parent=1 // pred_check_branch
      %367 = sbr.rel (0) target = $region21
    $region20: #{neqc_cnn_forward_batched.1} parent=1 // pred_region
      _
    $region21: #{neqc_cnn_forward_batched.1} parent=1 // pred_fallthru
      _
    %368 = vsyncpa [#allocation3], 1

</llo_original>
